<compile_context>
chip_gen: v6e
topology: v6e:2x2x1
jax: 0.10.0
libtpu: 0.0.40
codegen_flags: <defaults>
</compile_context>

<pallas_src>
import functools

import jax
import jax.numpy as jnp
from jax.experimental import pallas as pl
from jax.experimental.pallas import tpu as pltpu


def _mlp_kernel(x_ref, w1_ref, b1_ref, w2_ref, b2_ref, w3t_ref, b3_ref, o_ref):
    x = x_ref[...]            # (bb, 3)  f32
    w1 = w1_ref[...]          # (3, 128) f32

    # Layer 1: K=3 is degenerate for the MXU -> three broadcast FMAs on the VPU.
    h1 = (x[:, 0:1] * w1[0:1, :]
          + x[:, 1:2] * w1[1:2, :]
          + x[:, 2:3] * w1[2:3, :]
          + b1_ref[...])
    h1 = jnp.maximum(h1, 0.0)                                   # (bb, 128) f32

    # Layer 2: exact 128x128 MXU tile, bf16 operands, f32 accumulation.
    h2 = jnp.dot(h1.astype(jnp.bfloat16), w2_ref[...],
                 preferred_element_type=jnp.float32) + b2_ref[...]
    h2 = jnp.maximum(h2, 0.0)                                   # (bb, 128) f32

    # Layer 3: only 2 outputs -> two f32 VPU multiplies + XLU lane reductions
    # against the resident w3^T rows instead of a full 128-wide MXU pass.
    o0 = jnp.sum(h2 * w3t_ref[0:1, :], axis=-1, keepdims=True)  # (bb, 1)
    o1 = jnp.sum(h2 * w3t_ref[1:2, :], axis=-1, keepdims=True)  # (bb, 1)
    out = jnp.concatenate([o0, o1], axis=-1) + b3_ref[...]      # (bb, 2)
    o_ref[...] = out.astype(o_ref.dtype)


def _round_up(n, m):
    return ((n + m - 1) // m) * m


def prepare_params(params, hidden_pad=128):
    """One-time parameter layout prep (call once, NOT inside the per-call forward).

    Pads the hidden dim 100 -> 128 with zeros (exact), casts the layer-2 MXU operand
    to bf16, and pre-transposes w3 so its rows are lane-dense inside the kernel.
    """
    in_dim, H = params["w1"].shape
    out_dim = params["w3"].shape[1]
    Hp = hidden_pad
    assert Hp >= H

    w1p = jnp.zeros((in_dim, Hp), jnp.float32).at[:, :H].set(params["w1"])
    b1p = jnp.zeros((1, Hp), jnp.float32).at[:, :H].set(params["b1"].reshape(1, H))
    w2p = jnp.zeros((Hp, Hp), jnp.bfloat16).at[:H, :H].set(
        params["w2"].astype(jnp.bfloat16))
    b2p = jnp.zeros((1, Hp), jnp.float32).at[:, :H].set(params["b2"].reshape(1, H))
    w3t = jnp.zeros((out_dim, Hp), jnp.float32).at[:, :H].set(params["w3"].T)
    b3 = params["b3"].reshape(1, out_dim).astype(jnp.float32)
    return {"w1": w1p, "b1": b1p, "w2": w2p, "b2": b2p, "w3t": w3t, "b3": b3}


@functools.partial(jax.jit, static_argnames=("block_b",))
def dynamics_nlp_forward(x, prepped, block_b=2048):
    """x: (B, 3) float32.  prepped: output of prepare_params.  Returns (B, 2) f32."""
    B, in_dim = x.shape
    Hp = prepped["w1"].shape[1]          # 128 (padded hidden)
    out_dim = prepped["b3"].shape[1]     # 2

    # Batch tile: large to amortize per-step overhead, but never bigger than the
    # (8-rounded) batch itself.
    bb = min(block_b, _round_up(max(B, 1), 8))
    # Keep >= 2 grid steps when the batch is big enough so v7x megacore
    # (dimension_semantics=("parallel",)) gives work to both TensorCores.
    if B > 1024 and _round_up(B, bb) == bb:
        bb = _round_up(pl.cdiv(B, 2), 8)
    B_pad = _round_up(B, bb)
    if B_pad != B:
        x = jnp.pad(x, ((0, B_pad - B), (0, 0)))
    grid = (B_pad // bb,)

    out = pl.pallas_call(
        _mlp_kernel,
        out_shape=jax.ShapeDtypeStruct((B_pad, out_dim), jnp.float32),
        grid_spec=pl.GridSpec(
            grid=grid,
            in_specs=[
                pl.BlockSpec((bb, in_dim), lambda i: (i, 0)),     # x tile
                pl.BlockSpec((in_dim, Hp), lambda i: (0, 0)),     # w1 (resident)
                pl.BlockSpec((1, Hp), lambda i: (0, 0)),          # b1
                pl.BlockSpec((Hp, Hp), lambda i: (0, 0)),         # w2 (bf16, resident)
                pl.BlockSpec((1, Hp), lambda i: (0, 0)),          # b2
                pl.BlockSpec((out_dim, Hp), lambda i: (0, 0)),    # w3^T (resident)
                pl.BlockSpec((1, out_dim), lambda i: (0, 0)),     # b3
            ],
            out_specs=pl.BlockSpec((bb, out_dim), lambda i: (i, 0)),
        ),
        compiler_params=pltpu.CompilerParams(
            dimension_semantics=("parallel",),
            # ~8 MiB peak at bb=2048; 32 MiB gives headroom for block_b sweeps up to
            # ~8192 and is safe on v5e (128 MiB phys), v6e (128 MiB), v7x (64 MiB).
            vmem_limit_bytes=32 * 1024 * 1024,
        ),
    )(x, prepped["w1"], prepped["b1"], prepped["w2"], prepped["b2"],
      prepped["w3t"], prepped["b3"])

    return out[:B]


def init_params(key):
    """Deterministic init mimicking PyTorch nn.Linear default:
    U(-1/sqrt(fan_in), 1/sqrt(fan_in)) for both weights and biases."""
    def linear_init(k, fan_in, fan_out):
        kw, kb = jax.random.split(k)
        bound = 1.0 / jnp.sqrt(fan_in)
        w = jax.random.uniform(kw, (fan_in, fan_out), jnp.float32, -bound, bound)
        b = jax.random.uniform(kb, (1, fan_out), jnp.float32, -bound, bound)
        return w, b

    k1, k2, k3 = jax.random.split(key, 3)
    w1, b1 = linear_init(k1, 3, 100)
    w2, b2 = linear_init(k2, 100, 100)
    w3, b3 = linear_init(k3, 100, 2)
    return {"w1": w1, "b1": b1, "w2": w2, "b2": b2, "w3": w3, "b3": b3}


def reference_forward(x, params):
    h1 = jnp.maximum(x @ params["w1"] + params["b1"], 0.0)
    h2 = jnp.maximum(h1 @ params["w2"] + params["b2"], 0.0)
    return h2 @ params["w3"] + params["b3"]


if __name__ == "__main__":
    key = jax.random.PRNGKey(0)
    kx, kx2, kx3, kp = jax.random.split(key, 4)
    params = init_params(kp)
    prepped = prepare_params(params)          # one-time layout prep

    # Small demo batch (tile capped to batch, single grid step).
    B = 32
    x = jax.random.normal(kx, (B, 3), jnp.float32)
    out = jax.block_until_ready(dynamics_nlp_forward(x, prepped))
    ref = reference_forward(x, params)
    assert out.shape == (B, 2)
    # bf16 MXU operands on layer 2 (f32 accumulation) -> loosened tolerance.
    assert jnp.allclose(out, ref, atol=2e-2, rtol=2e-2), "mismatch vs pure-JAX reference"

    # Non-divisible batch: exercises padding.
    B2 = 1000
    x2 = jax.random.normal(kx2, (B2, 3), jnp.float32)
    out2 = jax.block_until_ready(dynamics_nlp_forward(x2, prepped))
    ref2 = reference_forward(x2, params)
    assert out2.shape == (B2, 2)
    assert jnp.allclose(out2, ref2, atol=2e-2, rtol=2e-2), "mismatch on padded batch"

    # Larger batch with explicit block_b: exercises multi-step grid (megacore path).
    B3 = 3000
    x3 = jax.random.normal(kx3, (B3, 3), jnp.float32)
    out3 = jax.block_until_ready(dynamics_nlp_forward(x3, prepped, block_b=1024))
    ref3 = reference_forward(x3, params)
    assert out3.shape == (B3, 2)
    assert jnp.allclose(out3, ref3, atol=2e-2, rtol=2e-2), "mismatch on multi-step grid"

    print("KERNEL_OK")
</pallas_src>

<mosaic_0001>
module attributes {stable_mosaic.version = 11 : i64} {
  func.func @_mlp_kernel(%arg0: i32, %arg1: memref<32x3xf32, #tpu.memory_space<vmem>>, %arg2: memref<3x128xf32, #tpu.memory_space<vmem>>, %arg3: memref<1x128xf32, #tpu.memory_space<vmem>>, %arg4: memref<128x128xbf16, #tpu.memory_space<vmem>>, %arg5: memref<1x128xf32, #tpu.memory_space<vmem>>, %arg6: memref<2x128xf32, #tpu.memory_space<vmem>>, %arg7: memref<1x2xf32, #tpu.memory_space<vmem>>, %arg8: memref<32x2xf32, #tpu.memory_space<vmem>>) attributes {dimension_semantics = [#tpu.dimension_semantics<parallel>], iteration_bounds = array<i64: 1>, scalar_prefetch = 0 : i64, scratch_operands = 0 : i64, tpu.core_type = #tpu.core_type<tc>, window_params = [{transform_indices = @transform_0, window_bounds = array<i64: 32, 3>}, {pipeline_mode = #tpu.pipeline_mode<synchronous>, transform_indices = @transform_1, window_bounds = array<i64: 3, 128>}, {pipeline_mode = #tpu.pipeline_mode<synchronous>, transform_indices = @transform_2, window_bounds = array<i64: 1, 128>}, {pipeline_mode = #tpu.pipeline_mode<synchronous>, transform_indices = @transform_3, window_bounds = array<i64: 128, 128>}, {pipeline_mode = #tpu.pipeline_mode<synchronous>, transform_indices = @transform_4, window_bounds = array<i64: 1, 128>}, {pipeline_mode = #tpu.pipeline_mode<synchronous>, transform_indices = @transform_5, window_bounds = array<i64: 2, 128>}, {pipeline_mode = #tpu.pipeline_mode<synchronous>, transform_indices = @transform_6, window_bounds = array<i64: 1, 2>}, {transform_indices = @transform_7, window_bounds = array<i64: 32, 2>}]} {
    %c0 = arith.constant 0 : index
    %c0_0 = arith.constant 0 : index
    %0 = vector.load %arg1[%c0, %c0_0] : memref<32x3xf32, #tpu.memory_space<vmem>>, vector<32x3xf32>
    %c0_1 = arith.constant 0 : index
    %c0_2 = arith.constant 0 : index
    %1 = vector.load %arg2[%c0_1, %c0_2] : memref<3x128xf32, #tpu.memory_space<vmem>>, vector<3x128xf32>
    %2 = vector.extract_strided_slice %0 {offsets = [0, 0], sizes = [32, 1], strides = [1, 1]} : vector<32x3xf32> to vector<32x1xf32>
    %3 = vector.extract_strided_slice %1 {offsets = [0, 0], sizes = [1, 128], strides = [1, 1]} : vector<3x128xf32> to vector<1x128xf32>
    %4 = vector.broadcast %2 : vector<32x1xf32> to vector<32x128xf32>
    %5 = vector.broadcast %3 : vector<1x128xf32> to vector<32x128xf32>
    %6 = arith.mulf %4, %5 : vector<32x128xf32>
    %7 = vector.extract_strided_slice %0 {offsets = [0, 1], sizes = [32, 1], strides = [1, 1]} : vector<32x3xf32> to vector<32x1xf32>
    %8 = vector.extract_strided_slice %1 {offsets = [1, 0], sizes = [1, 128], strides = [1, 1]} : vector<3x128xf32> to vector<1x128xf32>
    %9 = vector.broadcast %7 : vector<32x1xf32> to vector<32x128xf32>
    %10 = vector.broadcast %8 : vector<1x128xf32> to vector<32x128xf32>
    %11 = arith.mulf %9, %10 : vector<32x128xf32>
    %12 = arith.addf %6, %11 : vector<32x128xf32>
    %13 = vector.extract_strided_slice %0 {offsets = [0, 2], sizes = [32, 1], strides = [1, 1]} : vector<32x3xf32> to vector<32x1xf32>
    %14 = vector.extract_strided_slice %1 {offsets = [2, 0], sizes = [1, 128], strides = [1, 1]} : vector<3x128xf32> to vector<1x128xf32>
    %15 = vector.broadcast %13 : vector<32x1xf32> to vector<32x128xf32>
    %16 = vector.broadcast %14 : vector<1x128xf32> to vector<32x128xf32>
    %17 = arith.mulf %15, %16 : vector<32x128xf32>
    %18 = arith.addf %12, %17 : vector<32x128xf32>
    %c0_3 = arith.constant 0 : index
    %c0_4 = arith.constant 0 : index
    %19 = vector.load %arg3[%c0_3, %c0_4] : memref<1x128xf32, #tpu.memory_space<vmem>>, vector<1x128xf32>
    %20 = vector.broadcast %19 : vector<1x128xf32> to vector<32x128xf32>
    %21 = arith.addf %18, %20 : vector<32x128xf32>
    %cst = arith.constant 0.000000e+00 : f32
    %22 = vector.broadcast %cst : f32 to vector<32x128xf32>
    %23 = arith.maximumf %21, %22 : vector<32x128xf32>
    %24 = arith.truncf %23 : vector<32x128xf32> to vector<32x128xbf16>
    %c0_5 = arith.constant 0 : index
    %c0_6 = arith.constant 0 : index
    %25 = vector.load %arg4[%c0_5, %c0_6] : memref<128x128xbf16, #tpu.memory_space<vmem>>, vector<128x128xbf16>
    %cst_7 = arith.constant dense<0.000000e+00> : vector<32x128xf32>
    %26 = tpu.matmul %24, %25, %cst_7 {dimension_numbers = #tpu.dot_dimension_numbers<[1], [0], [0], [1], [0, 0, 1, 1], [], []>} : vector<32x128xbf16>, vector<128x128xbf16>, vector<32x128xf32> -> vector<32x128xf32>
    %c0_8 = arith.constant 0 : index
    %c0_9 = arith.constant 0 : index
    %27 = vector.load %arg5[%c0_8, %c0_9] : memref<1x128xf32, #tpu.memory_space<vmem>>, vector<1x128xf32>
    %28 = vector.broadcast %27 : vector<1x128xf32> to vector<32x128xf32>
    %29 = arith.addf %26, %28 : vector<32x128xf32>
    %cst_10 = arith.constant 0.000000e+00 : f32
    %30 = vector.broadcast %cst_10 : f32 to vector<32x128xf32>
    %31 = arith.maximumf %29, %30 : vector<32x128xf32>
    %c0_11 = arith.constant 0 : index
    %c0_12 = arith.constant 0 : index
    %32 = vector.load %arg6[%c0_11, %c0_12] : memref<2x128xf32, #tpu.memory_space<vmem>>, vector<1x128xf32>
    %33 = vector.broadcast %32 : vector<1x128xf32> to vector<32x128xf32>
    %34 = arith.mulf %31, %33 : vector<32x128xf32>
    %cst_13 = arith.constant dense<0.000000e+00> : vector<32xf32>
    %35 = vector.multi_reduction <add>, %34, %cst_13 [1] : vector<32x128xf32> to vector<32xf32>
    %36 = vector.shape_cast %35 : vector<32xf32> to vector<32x1xf32>
    %c1 = arith.constant 1 : index
    %c0_14 = arith.constant 0 : index
    %37 = vector.load %arg6[%c1, %c0_14] : memref<2x128xf32, #tpu.memory_space<vmem>>, vector<1x128xf32>
    %38 = vector.broadcast %37 : vector<1x128xf32> to vector<32x128xf32>
    %39 = arith.mulf %31, %38 : vector<32x128xf32>
    %cst_15 = arith.constant dense<0.000000e+00> : vector<32xf32>
    %40 = vector.multi_reduction <add>, %39, %cst_15 [1] : vector<32x128xf32> to vector<32xf32>
    %41 = vector.shape_cast %40 : vector<32xf32> to vector<32x1xf32>
    %42 = tpu.concatenate %36, %41 in 1 : vector<32x1xf32>, vector<32x1xf32> -> vector<32x2xf32>
    %c0_16 = arith.constant 0 : index
    %c0_17 = arith.constant 0 : index
    %43 = vector.load %arg7[%c0_16, %c0_17] : memref<1x2xf32, #tpu.memory_space<vmem>>, vector<1x2xf32>
    %44 = vector.broadcast %43 : vector<1x2xf32> to vector<32x2xf32>
    %45 = arith.addf %42, %44 : vector<32x2xf32>
    %c0_18 = arith.constant 0 : index
    %c0_19 = arith.constant 0 : index
    %46 = vector.load %arg8[%c0_18, %c0_19] : memref<32x2xf32, #tpu.memory_space<vmem>>, vector<32x2xf32>
    tpu.vector_store %arg8[%c0_18, %c0_19], %45 {strides = array<i32>} : memref<32x2xf32, #tpu.memory_space<vmem>>, vector<32x2xf32>,
    return
  }
  func.func @transform_0(%arg0: i32) -> (i32, i32) {
    %c0_i32 = arith.constant 0 : i32
    %c0_i32_0 = arith.constant 0 : i32
    return %arg0, %c0_i32 : i32, i32
  }
  func.func @transform_1(%arg0: i32) -> (i32, i32) {
    %c0_i32 = arith.constant 0 : i32
    %c0_i32_0 = arith.constant 0 : i32
    %c0_i32_1 = arith.constant 0 : i32
    return %c0_i32, %c0_i32_0 : i32, i32
  }
  func.func @transform_2(%arg0: i32) -> (i32, i32) {
    %c0_i32 = arith.constant 0 : i32
    %c0_i32_0 = arith.constant 0 : i32
    %c0_i32_1 = arith.constant 0 : i32
    return %c0_i32, %c0_i32_0 : i32, i32
  }
  func.func @transform_3(%arg0: i32) -> (i32, i32) {
    %c0_i32 = arith.constant 0 : i32
    %c0_i32_0 = arith.constant 0 : i32
    %c0_i32_1 = arith.constant 0 : i32
    return %c0_i32, %c0_i32_0 : i32, i32
  }
  func.func @transform_4(%arg0: i32) -> (i32, i32) {
    %c0_i32 = arith.constant 0 : i32
    %c0_i32_0 = arith.constant 0 : i32
    %c0_i32_1 = arith.constant 0 : i32
    return %c0_i32, %c0_i32_0 : i32, i32
  }
  func.func @transform_5(%arg0: i32) -> (i32, i32) {
    %c0_i32 = arith.constant 0 : i32
    %c0_i32_0 = arith.constant 0 : i32
    %c0_i32_1 = arith.constant 0 : i32
    return %c0_i32, %c0_i32_0 : i32, i32
  }
  func.func @transform_6(%arg0: i32) -> (i32, i32) {
    %c0_i32 = arith.constant 0 : i32
    %c0_i32_0 = arith.constant 0 : i32
    %c0_i32_1 = arith.constant 0 : i32
    return %c0_i32, %c0_i32_0 : i32, i32
  }
  func.func @transform_7(%arg0: i32) -> (i32, i32) {
    %c0_i32 = arith.constant 0 : i32
    %c0_i32_0 = arith.constant 0 : i32
    return %arg0, %c0_i32 : i32, i32
  }
}

</mosaic_0001>

<llo_original>
// kernel: dynamics_nlp_forward.1
$region0: #{dynamics_nlp_forward.1}
  #allocation0 [shape = 'u32[]', space=smem, size = 0x4, offset = 0x4, fixed_abs, tag = 'smem constant byte address 0x4 - core index']
  #allocation1 [shape = 'u32[144,128]{1,0:T(1,128)}', space=vmem, size = 0x12000, scoped, tag = 'internal scratch']
  %s0 = inlined_call_operand.vmem [shape: f32[32,3], index: 0, kind: input, shape index: {}]
  %s1 = inlined_call_operand.vmem [shape: f32[3,128], index: 1, kind: input, shape index: {}]
  %s2 = inlined_call_operand.vmem [shape: f32[1,128], index: 2, kind: input, shape index: {}]
  %s3 = inlined_call_operand.hbm [shape: bf16[128,128], index: 3, kind: input, shape index: {}]
  %s4 = inlined_call_operand.vmem [shape: f32[1,128], index: 4, kind: input, shape index: {}]
  %s5 = inlined_call_operand.vmem [shape: f32[2,128], index: 5, kind: input, shape index: {}]
  %s6 = inlined_call_operand.vmem [shape: f32[1,2], index: 6, kind: input, shape index: {}]
  %s7 = inlined_call_operand.vmem [shape: f32[32,2], index: 7, kind: output, shape index: {}]
  %s8 = sld [smem:[#allocation0]]
  $region42: #{dynamics_nlp_forward.1} parent=0
    _
  %s10 = ssub.s32 1, %s8
  %s11 = scalar_select 0, %s10, %s8
  $region1: #{dynamics_nlp_forward.1} parent=0
    #allocation2 [shape = 'u8[32768]{0}', space=vmem, size = 0x8000, scoped, tag = 'input window, operand 3, single buffered']
    #allocation3 [shape = 's32[1]{0}', space=sflag, size = 0x4, scoped, tag = 'scoped memory for dynamics_nlp_forward.1']
    %12 = vsyncpa [#allocation3], 0
    // Predicated region
    $region2: #{dynamics_nlp_forward.1} parent=1 // pred_check
      _
    $region3: #{dynamics_nlp_forward.1} parent=1 // pred_check_branch
      %14 = sbr.rel (0) target = $region5
    $region4: #{dynamics_nlp_forward.1} parent=1 // pred_region
      _
    $region5: #{dynamics_nlp_forward.1} parent=1 // pred_fallthru
      _
    // Predicated region
    $region6: #{dynamics_nlp_forward.1} parent=1 // pred_check
      _
    $region7: #{dynamics_nlp_forward.1} parent=1 // pred_check_branch
      %16 = sbr.rel (0) target = $region9
    $region8: #{dynamics_nlp_forward.1} parent=1 // pred_region
      _
    $region9: #{dynamics_nlp_forward.1} parent=1 // pred_fallthru
      _
    // Predicated region
    $region10: #{dynamics_nlp_forward.1} parent=1 // pred_check
      _
    $region11: #{dynamics_nlp_forward.1} parent=1 // pred_check_branch
      %18 = sbr.rel (0) target = $region13
    $region12: #{dynamics_nlp_forward.1} parent=1 // pred_region
      _
    $region13: #{dynamics_nlp_forward.1} parent=1 // pred_fallthru
      _
    // Predicated region
    $region14: #{dynamics_nlp_forward.1} parent=1 // pred_check
      _
    $region15: #{dynamics_nlp_forward.1} parent=1 // pred_check_branch
      %20 = sbr.rel (0) target = $region17
    $region16: #{dynamics_nlp_forward.1} parent=1 // pred_region
      %s22 = ssub.s32 1024, 1024
      %23 = vsyncadd [#allocation3], %s22
      %s24 = sshll.u32 [#allocation2], 4
      %s25 = int_to_ptr.vmem [resolvable:$true] %s24
      %30 = dma.hbm_to_vmem [thread:$0]  %s3, 1024, %s25, [#allocation3], 64, 64, 4
    $region17: #{dynamics_nlp_forward.1} parent=1 // pred_fallthru
      _
    // Predicated region
    $region18: #{dynamics_nlp_forward.1} parent=1 // pred_check
      _
    $region19: #{dynamics_nlp_forward.1} parent=1 // pred_check_branch
      %32 = sbr.rel (0) target = $region21
    $region20: #{dynamics_nlp_forward.1} parent=1 // pred_region
      _
    $region21: #{dynamics_nlp_forward.1} parent=1 // pred_fallthru
      _
    // Predicated region
    $region22: #{dynamics_nlp_forward.1} parent=1 // pred_check
      _
    $region23: #{dynamics_nlp_forward.1} parent=1 // pred_check_branch
      %34 = sbr.rel (0) target = $region25
    $region24: #{dynamics_nlp_forward.1} parent=1 // pred_region
      _
    $region25: #{dynamics_nlp_forward.1} parent=1 // pred_fallthru
      _
    // Predicated region
    $region26: #{dynamics_nlp_forward.1} parent=1 // pred_check
      _
    $region27: #{dynamics_nlp_forward.1} parent=1 // pred_check_branch
      %36 = sbr.rel (0) target = $region29
    $region28: #{dynamics_nlp_forward.1} parent=1 // pred_region
      _
    $region29: #{dynamics_nlp_forward.1} parent=1 // pred_fallthru
      _
    // Predicated region
    $region30: #{dynamics_nlp_forward.1} parent=1 // pred_check
      _
    $region31: #{dynamics_nlp_forward.1} parent=1 // pred_check_branch
      %38 = sbr.rel (0) target = $region33
    $region32: #{dynamics_nlp_forward.1} parent=1 // pred_region
      %39 = dma.done [#allocation3], 1024
    $region33: #{dynamics_nlp_forward.1} parent=1 // pred_fallthru
      _
    %v41 = vld [vmem:[%s0] sm:$0xff]
    %v42 = vld [vmem:[%s0 + $0x8] sm:$0xff]
    %v43 = vld [vmem:[%s0 + $0x10] sm:$0xff]
    %v44 = vld [vmem:[%s0 + $0x18] sm:$0xff]
    %v45 = vld [vmem:[%s1] sm:$0x7]
    %47 = vset.pattern.permute.xlu0 0
    %48 = vperm.xlu0 %47, %v41
    %v49 = vpop.permute.xlu0 %48
    %52 = vset.pattern.permute.xlu0 0
    %53 = vperm.xlu0 %52, %v42
    %v54 = vpop.permute.xlu0 %53
    %57 = vset.pattern.permute.xlu0 0
    %58 = vperm.xlu0 %57, %v43
    %v59 = vpop.permute.xlu0 %58
    %62 = vset.pattern.permute.xlu0 0
    %63 = vperm.xlu0 %62, %v44
    %v64 = vpop.permute.xlu0 %63
    %v66 = vlaneseq
    %v67 = vshrl.u32 %v66, 7
    %v68 = vsub.s32 0, %v67
    %v69 = vrot.slane %v45, %v68
    %v70 = vmul.f32 %v49, %v69
    %v71 = vmul.f32 %v54, %v69
    %v72 = vmul.f32 %v59, %v69
    %v73 = vmul.f32 %v64, %v69
    %74 = vset.pattern.permute.xlu0 1
    %75 = vperm.xlu0 %74, %v41
    %v76 = vpop.permute.xlu0 %75
    %78 = vset.pattern.permute.xlu0 1
    %79 = vperm.xlu0 %78, %v42
    %v80 = vpop.permute.xlu0 %79
    %82 = vset.pattern.permute.xlu0 1
    %83 = vperm.xlu0 %82, %v43
    %v84 = vpop.permute.xlu0 %83
    %86 = vset.pattern.permute.xlu0 1
    %87 = vperm.xlu0 %86, %v44
    %v88 = vpop.permute.xlu0 %87
    %v90 = vlaneseq
    %v91 = vshrl.u32 %v90, 7
    %v92 = vsub.s32 1, %v91
    %v93 = vrot.slane %v45, %v92
    %v94 = vmul.f32 %v76, %v93
    %v95 = vmul.f32 %v80, %v93
    %v96 = vmul.f32 %v84, %v93
    %v97 = vmul.f32 %v88, %v93
    %v98 = vadd.f32 %v70, %v94
    %v99 = vadd.f32 %v71, %v95
    %v100 = vadd.f32 %v72, %v96
    %v101 = vadd.f32 %v73, %v97
    %102 = vset.pattern.permute.xlu0 2
    %103 = vperm.xlu0 %102, %v41
    %v104 = vpop.permute.xlu0 %103
    %106 = vset.pattern.permute.xlu0 2
    %107 = vperm.xlu0 %106, %v42
    %v108 = vpop.permute.xlu0 %107
    %110 = vset.pattern.permute.xlu0 2
    %111 = vperm.xlu0 %110, %v43
    %v112 = vpop.permute.xlu0 %111
    %114 = vset.pattern.permute.xlu0 2
    %115 = vperm.xlu0 %114, %v44
    %v116 = vpop.permute.xlu0 %115
    %v118 = vlaneseq
    %v119 = vshrl.u32 %v118, 7
    %v120 = vsub.s32 2, %v119
    %v121 = vrot.slane %v45, %v120
    %v122 = vmul.f32 %v104, %v121
    %v123 = vmul.f32 %v108, %v121
    %v124 = vmul.f32 %v112, %v121
    %v125 = vmul.f32 %v116, %v121
    %v126 = vadd.f32 %v98, %v122
    %v127 = vadd.f32 %v99, %v123
    %v128 = vadd.f32 %v100, %v124
    %v129 = vadd.f32 %v101, %v125
    %v130 = vld [vmem:[%s2] sm:$0x1]
    %v132 = vlaneseq
    %v133 = vshrl.u32 %v132, 7
    %v134 = vsub.s32 0, %v133
    %v135 = vrot.slane %v130, %v134
    %v137 = vadd.f32 %v126, %v135
    %v138 = vadd.f32 %v127, %v135
    %v139 = vadd.f32 %v128, %v135
    %v140 = vadd.f32 %v129, %v135
    %v141 = vmax.f32 %v137, 0.0
    %v142 = vmax.f32 %v138, 0.0
    %v143 = vmax.f32 %v139, 0.0
    %v144 = vmax.f32 %v140, 0.0
    %v145 = vpack.c.bf16 %v142, %v141
    %v146 = vpack.c.bf16 %v144, %v143
    %v147 = vld [vmem:[#allocation2] sm:$0xf]
    %v148 = vld [vmem:[#allocation2 + $0x4] sm:$0xf]
    %v149 = vld [vmem:[#allocation2 + $0x8] sm:$0xf]
    %v150 = vld [vmem:[#allocation2 + $0xc] sm:$0xf]
    %v151 = vld [vmem:[#allocation2 + $0x10] sm:$0xf]
    %v152 = vld [vmem:[#allocation2 + $0x14] sm:$0xf]
    %v153 = vld [vmem:[#allocation2 + $0x18] sm:$0xf]
    %v154 = vld [vmem:[#allocation2 + $0x1c] sm:$0xf]
    %v155 = vld [vmem:[#allocation2 + $0x20] sm:$0xf]
    %v156 = vld [vmem:[#allocation2 + $0x24] sm:$0xf]
    %v157 = vld [vmem:[#allocation2 + $0x28] sm:$0xf]
    %v158 = vld [vmem:[#allocation2 + $0x2c] sm:$0xf]
    %v159 = vld [vmem:[#allocation2 + $0x30] sm:$0xf]
    %v160 = vld [vmem:[#allocation2 + $0x34] sm:$0xf]
    %v161 = vld [vmem:[#allocation2 + $0x38] sm:$0xf]
    %v162 = vld [vmem:[#allocation2 + $0x3c] sm:$0xf]
    %v163 = vld [vmem:[%s4] sm:$0x1]
    %v165 = vlaneseq
    %v166 = vshrl.u32 %v165, 7
    %v167 = vsub.s32 0, %v166
    %v168 = vrot.slane %v163, %v167
    %v186 = vunpack.c.l.b16 %v147
    %v187 = vunpack.c.l.b16 %v148
    %v188 = vunpack.c.l.b16 %v149
    %v189 = vunpack.c.l.b16 %v150
    %v190 = vunpack.c.l.b16 %v151
    %v191 = vunpack.c.l.b16 %v152
    %v192 = vunpack.c.l.b16 %v153
    %v193 = vunpack.c.l.b16 %v154
    %v194 = vunpack.c.l.b16 %v155
    %v195 = vunpack.c.l.b16 %v156
    %v196 = vunpack.c.l.b16 %v157
    %v197 = vunpack.c.l.b16 %v158
    %v198 = vunpack.c.l.b16 %v159
    %v199 = vunpack.c.l.b16 %v160
    %v200 = vunpack.c.l.b16 %v161
    %v201 = vunpack.c.l.b16 %v162
    %v202 = vpack.c.b16 %v187, %v186
    %v203 = vpack.c.b16 %v189, %v188
    %v204 = vpack.c.b16 %v191, %v190
    %v205 = vpack.c.b16 %v193, %v192
    %v206 = vpack.c.b16 %v195, %v194
    %v207 = vpack.c.b16 %v197, %v196
    %v208 = vpack.c.b16 %v199, %v198
    %v209 = vpack.c.b16 %v201, %v200
    %218 = vmatprep.subr.bf16.mxu0 0
    %219 = vmatpush1.bf16.msra.mxu0 %v209
    %220 = vmatprep.subr.bf16.mxu0 0
    %221 = vmatpush1.bf16.msra.mxu0 %v208
    %222 = vmatprep.subr.bf16.mxu0 0
    %223 = vmatpush1.bf16.msra.mxu0 %v207
    %224 = vmatprep.subr.bf16.mxu0 0
    %225 = vmatpush1.bf16.msra.mxu0 %v206
    %226 = vmatprep.subr.bf16.mxu0 0
    %227 = vmatpush1.bf16.msra.mxu0 %v205
    %228 = vmatprep.subr.bf16.mxu0 0
    %229 = vmatpush1.bf16.msra.mxu0 %v204
    %230 = vmatprep.subr.bf16.mxu0 0
    %231 = vmatpush1.bf16.msra.mxu0 %v203
    %232 = vmatprep.subr.bf16.mxu0 0
    %233 = vmatpush1.bf16.msra.mxu0 %v202
    %234 = vmatprep.subr.bf16.mxu0 0
    %235 = vmatpush2.bf16.msra.mxu0 0
    %236 = vmatprep.subr.bf16.mxu0 0
    %237 = vmatpush2.bf16.msra.mxu0 0
    %238 = vmatprep.subr.bf16.mxu0 0
    %239 = vmatpush2.bf16.msra.mxu0 0
    %240 = vmatprep.subr.bf16.mxu0 0
    %241 = vmatpush2.bf16.msra.mxu0 0
    %242 = vmatprep.subr.bf16.mxu0 0
    %243 = vmatpush2.bf16.msra.mxu0 0
    %244 = vmatprep.subr.bf16.mxu0 0
    %245 = vmatpush2.bf16.msra.mxu0 0
    %246 = vmatprep.subr.bf16.mxu0 0
    %247 = vmatpush2.bf16.msra.mxu0 0
    %248 = vmatprep.subr.bf16.mxu0 0
    %249 = vmatpush2.bf16.msra.mxu0 0
    %250 = vmatprep.mubr.bf16.mxu0 0
    %251 = vmatmul.mubr.bf16.gmra.mxu0 %v145
    %v252 = vpop.f32.mrf.mxu0
    %v253 = vadd.f32 %v168, %v252
    %v254 = vpop.f32.mrf.mxu0
    %v255 = vpop.f32.mrf.mxu0
    %v256 = vadd.f32 %v168, %v255
    %v257 = vpop.f32.mrf.mxu0
    %258 = vmatprep.mubr.bf16.mxu0 0
    %259 = vmatmul.mubr.bf16.gmra.mxu0 %v146
    %v260 = vpop.f32.mrf.mxu0
    %v261 = vadd.f32 %v168, %v260
    %v262 = vpop.f32.mrf.mxu0
    %v263 = vpop.f32.mrf.mxu0
    %v264 = vadd.f32 %v168, %v263
    %v265 = vpop.f32.mrf.mxu0
    %266 = vdwg.mxu0
    %v267 = vmax.f32 %v253, 0.0
    %v268 = vmax.f32 %v256, 0.0
    %v269 = vmax.f32 %v261, 0.0
    %v270 = vmax.f32 %v264, 0.0
    %v271 = vld [vmem:[%s5] sm:$0x1]
    %v272 = vlaneseq
    %v273 = vshrl.u32 %v272, 7
    %v274 = vsub.s32 0, %v273
    %v275 = vrot.slane %v271, %v274
    %v276 = vmul.f32 %v267, %v275
    %v277 = vmul.f32 %v268, %v275
    %v278 = vmul.f32 %v269, %v275
    %v279 = vmul.f32 %v270, %v275
    %280 = vadd.xlane.f32.xlu0 %v276
    %v281 = vpop.xlane.xlu0 %280
    %282 = vadd.xlane.f32.xlu0 %v277
    %v283 = vpop.xlane.xlu0 %282
    %284 = vadd.xlane.f32.xlu0 %v278
    %v285 = vpop.xlane.xlu0 %284
    %286 = vadd.xlane.f32.xlu0 %v279
    %v287 = vpop.xlane.xlu0 %286
    %v288 = vld [vmem:[%s5 + $0x1] sm:$0x1]
    %v289 = vlaneseq
    %v290 = vshrl.u32 %v289, 7
    %v291 = vsub.s32 0, %v290
    %v292 = vrot.slane %v288, %v291
    %v293 = vmul.f32 %v267, %v292
    %v294 = vmul.f32 %v268, %v292
    %v295 = vmul.f32 %v269, %v292
    %v296 = vmul.f32 %v270, %v292
    %297 = vadd.xlane.f32.xlu0 %v293
    %v298 = vpop.xlane.xlu0 %297
    %299 = vadd.xlane.f32.xlu0 %v294
    %v300 = vpop.xlane.xlu0 %299
    %301 = vadd.xlane.f32.xlu0 %v295
    %v302 = vpop.xlane.xlu0 %301
    %303 = vadd.xlane.f32.xlu0 %v296
    %v304 = vpop.xlane.xlu0 %303
    %vm305 = vcmask 7168
    %v306 = vsel %vm305, %v281, %v298
    %v307 = vsel %vm305, %v283, %v300
    %v308 = vsel %vm305, %v285, %v302
    %v309 = vsel %vm305, %v287, %v304
    %v310 = vld [vmem:[%s6] sm:$0x1]
    %v312 = vlaneseq
    %v313 = vshrl.u32 %v312, 7
    %v314 = vsub.s32 0, %v313
    %v315 = vrot.slane %v310, %v314
    %v317 = vadd.f32 %v306, %v315
    %v318 = vadd.f32 %v307, %v315
    %v319 = vadd.f32 %v308, %v315
    %v320 = vadd.f32 %v309, %v315
    %vm321 = vcmask 15360
    %322 = vst.msk [vmem:[%s7] sm:$0xff] %vm321, %v317
    %323 = vst.msk [vmem:[%s7 + $0x8] sm:$0xff] %vm321, %v318
    %324 = vst.msk [vmem:[%s7 + $0x10] sm:$0xff] %vm321, %v319
    %325 = vst.msk [vmem:[%s7 + $0x18] sm:$0xff] %vm321, %v320
    // Predicated region
    $region34: #{dynamics_nlp_forward.1} parent=1 // pred_check
      _
    $region35: #{dynamics_nlp_forward.1} parent=1 // pred_check_branch
      %327 = sbr.rel (0) target = $region37
    $region36: #{dynamics_nlp_forward.1} parent=1 // pred_region
      _
    $region37: #{dynamics_nlp_forward.1} parent=1 // pred_fallthru
      _
    // Predicated region
    $region38: #{dynamics_nlp_forward.1} parent=1 // pred_check
      _
    $region39: #{dynamics_nlp_forward.1} parent=1 // pred_check_branch
      %329 = sbr.rel (0) target = $region41
    $region40: #{dynamics_nlp_forward.1} parent=1 // pred_region
      _
    $region41: #{dynamics_nlp_forward.1} parent=1 // pred_fallthru
      _
    %330 = vsyncpa [#allocation3], 1

</llo_original>
